<compile_context>
chip_gen: v5e
topology: v5e:2x2
jax: 0.10.0
libtpu: 0.0.40
codegen_flags: <defaults>
</compile_context>

<pallas_src>
import functools

import jax
import jax.numpy as jnp
from jax import lax
from jax.experimental import pallas as pl
from jax.experimental.pallas import tpu as pltpu


def _round_up(n, m):
    return ((n + m - 1) // m) * m


# ---------------------------------------------------------------------------
# Fused kernel: per-L-chunk conv matmul -> ReLU -> running max ; score at last chunk
# ---------------------------------------------------------------------------
def zerogo_kernel(x_ref, w_ref, bconv_ref, go_t_ref, wg_t_ref, bg_ref, ws_ref,
                  out_ref, acc_ref, *, L_total):
    """
    x_ref     : (Bt, Lt, KC)   im2col slab tile (KC = K*C)
    w_ref     : (KC, Hp)       flattened conv weights, H zero-padded to Hp
    bconv_ref : (1, Hp)
    go_t_ref  : (D, Gp)        GO descriptors, transposed, G zero-padded to Gp
    wg_t_ref  : (Hp, D)        GO linear weights, transposed
    bg_ref    : (Hp, 1)
    ws_ref    : (Hp, Hp)
    out_ref   : (Bt, Gp)       logits tile (padded B rows / G cols sliced off by wrapper)
    acc_ref   : (Bt, Hp)       VMEM scratch: running max over L chunks
    """
    l = pl.program_id(1)
    nl = pl.num_programs(1)
    Bt, Lt, KC = x_ref.shape
    Hp = w_ref.shape[1]

    # ---- init running-max accumulator (ReLU outputs are >= 0, so 0-init is exact)
    @pl.when(l == 0)
    def _():
        acc_ref[...] = jnp.zeros_like(acc_ref)

    # ---- seq_model chunk: one im2col matmul + bias + ReLU, fold into running max
    rows = x_ref[...].reshape(Bt * Lt, KC)
    y = jnp.dot(rows, w_ref[...], preferred_element_type=jnp.float32)      # (Bt*Lt, Hp)
    y = jnp.maximum(y + bconv_ref[...], 0.0)
    y3 = y.reshape(Bt, Lt, Hp)

    if L_total % Lt:  # static: only needed when L was padded up to a chunk multiple
        pos = l * Lt + lax.broadcasted_iota(jnp.int32, (1, Lt, 1), 1)
        y3 = jnp.where(pos < L_total, y3, 0.0)                              # pad rows -> 0 (safe: ReLU >= 0)

    acc_ref[...] = jnp.maximum(acc_ref[...], jnp.max(y3, axis=1))           # (Bt, Hp)

    # ---- at the last L chunk: go_model + bilinear score (all lane-dense, no transposes)
    @pl.when(l == nl - 1)
    def _():
        govec_t = jnp.dot(wg_t_ref[...], go_t_ref[...],
                          preferred_element_type=jnp.float32) + bg_ref[...]  # (Hp, Gp)
        govec_t = jnp.maximum(govec_t, 0.0)
        t = jnp.dot(acc_ref[...], ws_ref[...],
                    preferred_element_type=jnp.float32)                      # (Bt, Hp)
        out_ref[...] = jnp.dot(t, govec_t,
                               preferred_element_type=jnp.float32)           # (Bt, Gp)


# ---------------------------------------------------------------------------
# One-time parameter re-layout (hoisted out of the per-call path)
# ---------------------------------------------------------------------------
def prepare_params(params):
    conv_w = params["conv_w"]            # (H, C, K)  PyTorch Conv1d weight layout
    conv_b = params["conv_b"]            # (H,)
    wg, bg, ws = params["wg"], params["bg"], params["ws"]
    H, C, K = conv_w.shape
    Hp = _round_up(H, 128)

    # Flatten conv taps for im2col:  w_flat[c*K + k, h] = conv_w[h, c, k]
    w_flat = conv_w.transpose(1, 2, 0).reshape(C * K, H)
    w_flat = jnp.pad(w_flat, ((0, 0), (0, Hp - H)))                          # (KC, Hp)
    b_conv = jnp.pad(conv_b, (0, Hp - H)).reshape(1, Hp)
    wg_t = jnp.pad(wg.T, ((0, Hp - H), (0, 0)))                              # (Hp, D)
    bg_col = jnp.pad(bg, (0, Hp - H)).reshape(Hp, 1)
    ws_p = jnp.pad(ws, ((0, Hp - H), (0, Hp - H)))                           # (Hp, Hp)
    return {"w_flat": w_flat, "b_conv": b_conv, "wg_t": wg_t,
            "bg_col": bg_col, "ws_p": ws_p}


# ---------------------------------------------------------------------------
# Forward wrapper
# ---------------------------------------------------------------------------
@functools.partial(jax.jit, static_argnames=("b_tile", "l_tile"))
def zerogo_forward(inp_seq, inp_go, prep, *, b_tile=8, l_tile=256):
    B, C, L = inp_seq.shape
    G, D = inp_go.shape
    KC, Hp = prep["w_flat"].shape
    K = KC // C
    pad = (K - 1) // 2
    Gp = _round_up(G, 128)

    l_tile = min(_round_up(l_tile, 8), _round_up(L, 8))
    Bp = _round_up(B, b_tile)
    Lp = _round_up(L, l_tile)

    # Per-call input glue (tiny): im2col slab  cols[b, l, c*K + k] = x_pad[b, c, l + k]
    x_pad = jnp.pad(inp_seq, ((0, 0), (0, 0), (pad, pad)))
    cols = jnp.stack([x_pad[:, :, k:k + L] for k in range(K)], axis=-1)      # (B, C, L, K)
    cols = cols.transpose(0, 2, 1, 3).reshape(B, L, KC)
    cols = jnp.pad(cols, ((0, Bp - B), (0, Lp - L), (0, 0)))                 # (Bp, Lp, KC)

    go_t = jnp.pad(inp_go.T, ((0, 0), (0, Gp - G)))                          # (D, Gp)

    grid = (Bp // b_tile, Lp // l_tile)

    flops = (2 * Bp * Lp * KC * Hp          # conv matmuls
             + 2 * D * Hp * Gp              # go linear
             + 2 * Bp * Hp * Hp             # prot @ Ws
             + 2 * Bp * Hp * Gp)            # score
    bytes_accessed = 4 * (cols.size + prep["w_flat"].size + prep["b_conv"].size
                          + go_t.size + prep["wg_t"].size + prep["bg_col"].size
                          + prep["ws_p"].size + Bp * Gp)

    logits_p = pl.pallas_call(
        functools.partial(zerogo_kernel, L_total=L),
        out_shape=jax.ShapeDtypeStruct((Bp, Gp), jnp.float32),
        grid_spec=pltpu.PrefetchScalarGridSpec(
            num_scalar_prefetch=0,
            grid=grid,
            in_specs=[
                pl.BlockSpec((b_tile, l_tile, KC), lambda b, l: (b, l, 0)),  # x tiles (pipelined)
                pl.BlockSpec((KC, Hp), lambda b, l: (0, 0)),                 # weights: resident
                pl.BlockSpec((1, Hp), lambda b, l: (0, 0)),
                pl.BlockSpec((D, Gp), lambda b, l: (0, 0)),
                pl.BlockSpec((Hp, D), lambda b, l: (0, 0)),
                pl.BlockSpec((Hp, 1), lambda b, l: (0, 0)),
                pl.BlockSpec((Hp, Hp), lambda b, l: (0, 0)),
            ],
            out_specs=pl.BlockSpec((b_tile, Gp), lambda b, l: (b, 0)),
            scratch_shapes=[pltpu.VMEM((b_tile, Hp), jnp.float32)],
        ),
        compiler_params=pltpu.CompilerParams(
            dimension_semantics=("parallel", "arbitrary"),
            vmem_limit_bytes=32 * 1024 * 1024,
        ),
        cost_estimate=pl.CostEstimate(flops=flops, transcendentals=0,
                                      bytes_accessed=bytes_accessed),
    )(cols, prep["w_flat"], prep["b_conv"], go_t, prep["wg_t"],
      prep["bg_col"], prep["ws_p"])

    return logits_p[:B, :G]


# ---------------------------------------------------------------------------
# Pure-JAX reference (matches the PyTorch module semantics)
# ---------------------------------------------------------------------------
def zerogo_reference(inp_seq, inp_go, params):
    B, C, L = inp_seq.shape
    H, _, K = params["conv_w"].shape
    pad = (K - 1) // 2
    x_pad = jnp.pad(inp_seq, ((0, 0), (0, 0), (pad, pad)))
    cols = jnp.stack([x_pad[:, :, k:k + L] for k in range(K)], axis=-1)      # (B, C, L, K)
    cols = cols.transpose(0, 2, 1, 3).reshape(B, L, C * K)
    w_flat = params["conv_w"].transpose(1, 2, 0).reshape(C * K, H)
    prot = jnp.max(jnp.maximum(cols @ w_flat + params["conv_b"], 0.0), axis=1)   # (B, H)
    govec = jnp.maximum(inp_go @ params["wg"] + params["bg"], 0.0)               # (G, H)
    return (prot @ params["ws"]) @ govec.T                                        # (B, G)


if __name__ == "__main__":
    # Small shapes: protein seq (B, C, L), GO descriptors (G, D)
    B, C, L = 2, 4, 16      # batch, seq channels, seq length
    H = 32                  # hidden / embedding dim
    G, D = 8, 16            # number of GO terms, GO descriptor dim
    K = 3                   # conv kernel width

    key = jax.random.PRNGKey(0)
    k_seq, k_go, k_cw, k_cb, k_wg, k_bg, k_ws = jax.random.split(key, 7)

    inp_seq = jax.random.normal(k_seq, (B, C, L), dtype=jnp.float32)
    inp_go = jax.random.normal(k_go, (G, D), dtype=jnp.float32)

    params = {
        "conv_w": 0.1 * jax.random.normal(k_cw, (H, C, K), dtype=jnp.float32),
        "conv_b": 0.1 * jax.random.normal(k_cb, (H,), dtype=jnp.float32),
        "wg": 0.1 * jax.random.normal(k_wg, (D, H), dtype=jnp.float32),
        "bg": 0.1 * jax.random.normal(k_bg, (H,), dtype=jnp.float32),
        "ws": 0.1 * jax.random.normal(k_ws, (H, H), dtype=jnp.float32),
    }

    prep = prepare_params(params)                    # one-time weight re-layout
    # l_tile=8 -> 2 L-chunks, exercising the running-max accumulator + pl.when paths.
    logits = zerogo_forward(inp_seq, inp_go, prep, b_tile=8, l_tile=8)
    jax.block_until_ready(logits)

    ref = zerogo_reference(inp_seq, inp_go, params)
    assert logits.shape == (B, G)
    assert jnp.allclose(logits, ref, atol=1e-4, rtol=1e-4)

    print("KERNEL_OK")
</pallas_src>

<mosaic_0001>
module attributes {stable_mosaic.version = 11 : i64} {
  func.func @zerogo_kernel(%arg0: i32, %arg1: i32, %arg2: memref<8x8x12xf32, #tpu.memory_space<vmem>>, %arg3: memref<12x128xf32, #tpu.memory_space<vmem>>, %arg4: memref<1x128xf32, #tpu.memory_space<vmem>>, %arg5: memref<16x128xf32, #tpu.memory_space<vmem>>, %arg6: memref<128x16xf32, #tpu.memory_space<vmem>>, %arg7: memref<128x1xf32, #tpu.memory_space<vmem>>, %arg8: memref<128x128xf32, #tpu.memory_space<vmem>>, %arg9: memref<8x128xf32, #tpu.memory_space<vmem>>, %arg10: memref<8x128xf32, #tpu.memory_space<vmem>>) attributes {dimension_semantics = [#tpu.dimension_semantics<parallel>, #tpu.dimension_semantics<arbitrary>], iteration_bounds = array<i64: 1, 2>, scalar_prefetch = 0 : i64, scratch_operands = 1 : i64, tpu.core_type = #tpu.core_type<tc>, window_params = [{transform_indices = @transform_0, window_bounds = array<i64: 8, 8, 12>}, {pipeline_mode = #tpu.pipeline_mode<synchronous>, transform_indices = @transform_1, window_bounds = array<i64: 12, 128>}, {pipeline_mode = #tpu.pipeline_mode<synchronous>, transform_indices = @transform_2, window_bounds = array<i64: 1, 128>}, {pipeline_mode = #tpu.pipeline_mode<synchronous>, transform_indices = @transform_3, window_bounds = array<i64: 16, 128>}, {pipeline_mode = #tpu.pipeline_mode<synchronous>, transform_indices = @transform_4, window_bounds = array<i64: 128, 16>}, {pipeline_mode = #tpu.pipeline_mode<synchronous>, transform_indices = @transform_5, window_bounds = array<i64: 128, 1>}, {pipeline_mode = #tpu.pipeline_mode<synchronous>, transform_indices = @transform_6, window_bounds = array<i64: 128, 128>}, {transform_indices = @transform_7, window_bounds = array<i64: 8, 128>}]} {
    %c0_i32 = arith.constant 0 : i32
    %0 = arith.cmpi eq, %arg1, %c0_i32 : i32
    %1 = arith.extui %0 : i1 to i32
    %c0_i32_0 = arith.constant 0 : i32
    %2 = arith.cmpi ne, %1, %c0_i32_0 : i32
    scf.if %2 {
      %cst_14 = arith.constant 0.000000e+00 : f32
      %20 = vector.broadcast %cst_14 : f32 to vector<8x128xf32>
      %c0_15 = arith.constant 0 : index
      %c0_16 = arith.constant 0 : index
      %21 = vector.load %arg10[%c0_15, %c0_16] : memref<8x128xf32, #tpu.memory_space<vmem>>, vector<8x128xf32>
      tpu.vector_store %arg10[%c0_15, %c0_16], %20 {strides = array<i32>} : memref<8x128xf32, #tpu.memory_space<vmem>>, vector<8x128xf32>,
    } else {
    }
    %c0 = arith.constant 0 : index
    %c0_1 = arith.constant 0 : index
    %c0_2 = arith.constant 0 : index
    %3 = vector.load %arg2[%c0, %c0_1, %c0_2] : memref<8x8x12xf32, #tpu.memory_space<vmem>>, vector<8x8x12xf32>
    %4 = vector.shape_cast %3 : vector<8x8x12xf32> to vector<64x12xf32>
    %c0_3 = arith.constant 0 : index
    %c0_4 = arith.constant 0 : index
    %5 = vector.load %arg3[%c0_3, %c0_4] : memref<12x128xf32, #tpu.memory_space<vmem>>, vector<12x128xf32>
    %cst = arith.constant dense<0.000000e+00> : vector<64x128xf32>
    %6 = tpu.matmul %4, %5, %cst {dimension_numbers = #tpu.dot_dimension_numbers<[1], [0], [0], [1], [0, 0, 1, 1], [], []>} : vector<64x12xf32>, vector<12x128xf32>, vector<64x128xf32> -> vector<64x128xf32>
    %c0_5 = arith.constant 0 : index
    %c0_6 = arith.constant 0 : index
    %7 = vector.load %arg4[%c0_5, %c0_6] : memref<1x128xf32, #tpu.memory_space<vmem>>, vector<1x128xf32>
    %8 = vector.broadcast %7 : vector<1x128xf32> to vector<64x128xf32>
    %9 = arith.addf %6, %8 : vector<64x128xf32>
    %cst_7 = arith.constant 0.000000e+00 : f32
    %10 = vector.broadcast %cst_7 : f32 to vector<64x128xf32>
    %11 = arith.maximumf %9, %10 : vector<64x128xf32>
    %12 = vector.shape_cast %11 : vector<64x128xf32> to vector<8x8x128xf32>
    %c0_8 = arith.constant 0 : index
    %c0_9 = arith.constant 0 : index
    %13 = vector.load %arg10[%c0_8, %c0_9] : memref<8x128xf32, #tpu.memory_space<vmem>>, vector<8x128xf32>
    %cst_10 = arith.constant dense<0xFF800000> : vector<8x128xf32>
    %14 = vector.multi_reduction <maximumf>, %12, %cst_10 [1] : vector<8x8x128xf32> to vector<8x128xf32>
    %15 = arith.maximumf %13, %14 : vector<8x128xf32>
    %c0_11 = arith.constant 0 : index
    %c0_12 = arith.constant 0 : index
    %16 = vector.load %arg10[%c0_11, %c0_12] : memref<8x128xf32, #tpu.memory_space<vmem>>, vector<8x128xf32>
    tpu.vector_store %arg10[%c0_11, %c0_12], %15 {strides = array<i32>} : memref<8x128xf32, #tpu.memory_space<vmem>>, vector<8x128xf32>,
    %c1_i32 = arith.constant 1 : i32
    %17 = arith.cmpi eq, %arg1, %c1_i32 : i32
    %18 = arith.extui %17 : i1 to i32
    %c0_i32_13 = arith.constant 0 : i32
    %19 = arith.cmpi ne, %18, %c0_i32_13 : i32
    scf.if %19 {
      %c0_14 = arith.constant 0 : index
      %c0_15 = arith.constant 0 : index
      %20 = vector.load %arg6[%c0_14, %c0_15] : memref<128x16xf32, #tpu.memory_space<vmem>>, vector<128x16xf32>
      %c0_16 = arith.constant 0 : index
      %c0_17 = arith.constant 0 : index
      %21 = vector.load %arg5[%c0_16, %c0_17] : memref<16x128xf32, #tpu.memory_space<vmem>>, vector<16x128xf32>
      %cst_18 = arith.constant dense<0.000000e+00> : vector<128x128xf32>
      %22 = tpu.matmul %20, %21, %cst_18 {dimension_numbers = #tpu.dot_dimension_numbers<[1], [0], [0], [1], [0, 0, 1, 1], [], []>} : vector<128x16xf32>, vector<16x128xf32>, vector<128x128xf32> -> vector<128x128xf32>
      %c0_19 = arith.constant 0 : index
      %c0_20 = arith.constant 0 : index
      %23 = vector.load %arg7[%c0_19, %c0_20] : memref<128x1xf32, #tpu.memory_space<vmem>>, vector<128x1xf32>
      %24 = vector.broadcast %23 : vector<128x1xf32> to vector<128x128xf32>
      %25 = arith.addf %22, %24 : vector<128x128xf32>
      %cst_21 = arith.constant 0.000000e+00 : f32
      %26 = vector.broadcast %cst_21 : f32 to vector<128x128xf32>
      %27 = arith.maximumf %25, %26 : vector<128x128xf32>
      %c0_22 = arith.constant 0 : index
      %c0_23 = arith.constant 0 : index
      %28 = vector.load %arg10[%c0_22, %c0_23] : memref<8x128xf32, #tpu.memory_space<vmem>>, vector<8x128xf32>
      %c0_24 = arith.constant 0 : index
      %c0_25 = arith.constant 0 : index
      %29 = vector.load %arg8[%c0_24, %c0_25] : memref<128x128xf32, #tpu.memory_space<vmem>>, vector<128x128xf32>
      %cst_26 = arith.constant dense<0.000000e+00> : vector<8x128xf32>
      %30 = tpu.matmul %28, %29, %cst_26 {dimension_numbers = #tpu.dot_dimension_numbers<[1], [0], [0], [1], [0, 0, 1, 1], [], []>} : vector<8x128xf32>, vector<128x128xf32>, vector<8x128xf32> -> vector<8x128xf32>
      %cst_27 = arith.constant dense<0.000000e+00> : vector<8x128xf32>
      %31 = tpu.matmul %30, %27, %cst_27 {dimension_numbers = #tpu.dot_dimension_numbers<[1], [0], [0], [1], [0, 0, 1, 1], [], []>} : vector<8x128xf32>, vector<128x128xf32>, vector<8x128xf32> -> vector<8x128xf32>
      %c0_28 = arith.constant 0 : index
      %c0_29 = arith.constant 0 : index
      %32 = vector.load %arg9[%c0_28, %c0_29] : memref<8x128xf32, #tpu.memory_space<vmem>>, vector<8x128xf32>
      tpu.vector_store %arg9[%c0_28, %c0_29], %31 {strides = array<i32>} : memref<8x128xf32, #tpu.memory_space<vmem>>, vector<8x128xf32>,
    } else {
    }
    return
  }
  func.func @transform_0(%arg0: i32, %arg1: i32) -> (i32, i32, i32) {
    %c0_i32 = arith.constant 0 : i32
    %c0_i32_0 = arith.constant 0 : i32
    return %arg0, %arg1, %c0_i32 : i32, i32, i32
  }
  func.func @transform_1(%arg0: i32, %arg1: i32) -> (i32, i32) {
    %c0_i32 = arith.constant 0 : i32
    %c0_i32_0 = arith.constant 0 : i32
    %c0_i32_1 = arith.constant 0 : i32
    return %c0_i32, %c0_i32_0 : i32, i32
  }
  func.func @transform_2(%arg0: i32, %arg1: i32) -> (i32, i32) {
    %c0_i32 = arith.constant 0 : i32
    %c0_i32_0 = arith.constant 0 : i32
    %c0_i32_1 = arith.constant 0 : i32
    return %c0_i32, %c0_i32_0 : i32, i32
  }
  func.func @transform_3(%arg0: i32, %arg1: i32) -> (i32, i32) {
    %c0_i32 = arith.constant 0 : i32
    %c0_i32_0 = arith.constant 0 : i32
    %c0_i32_1 = arith.constant 0 : i32
    return %c0_i32, %c0_i32_0 : i32, i32
  }
  func.func @transform_4(%arg0: i32, %arg1: i32) -> (i32, i32) {
    %c0_i32 = arith.constant 0 : i32
    %c0_i32_0 = arith.constant 0 : i32
    %c0_i32_1 = arith.constant 0 : i32
    return %c0_i32, %c0_i32_0 : i32, i32
  }
  func.func @transform_5(%arg0: i32, %arg1: i32) -> (i32, i32) {
    %c0_i32 = arith.constant 0 : i32
    %c0_i32_0 = arith.constant 0 : i32
    %c0_i32_1 = arith.constant 0 : i32
    return %c0_i32, %c0_i32_0 : i32, i32
  }
  func.func @transform_6(%arg0: i32, %arg1: i32) -> (i32, i32) {
    %c0_i32 = arith.constant 0 : i32
    %c0_i32_0 = arith.constant 0 : i32
    %c0_i32_1 = arith.constant 0 : i32
    return %c0_i32, %c0_i32_0 : i32, i32
  }
  func.func @transform_7(%arg0: i32, %arg1: i32) -> (i32, i32) {
    %c0_i32 = arith.constant 0 : i32
    %c0_i32_0 = arith.constant 0 : i32
    return %arg0, %c0_i32 : i32, i32
  }
}

</mosaic_0001>

<llo_original>
// kernel: zerogo_forward.1
$region0: #{zerogo_forward.1}
  #allocation0 [shape = 'u32[]', space=smem, size = 0x4, offset = 0x4, fixed_abs, tag = 'smem constant byte address 0x4 - core index']
  #allocation1 [shape = 'u32[72,128]{1,0:T(1,128)}', space=vmem, size = 0x9000, scoped, tag = 'internal scratch']
  #allocation2 [shape = 'f32[8,128]{1,0:T(8,128)}', space=vmem, size = 0x1000, scoped, tag = 'scratch operand']
  %s0 = inlined_call_operand.vmem [shape: f32[8,16,12], index: 0, kind: input, shape index: {}]
  %s1 = inlined_call_operand.vmem [shape: f32[12,128], index: 1, kind: input, shape index: {}]
  %s2 = inlined_call_operand.vmem [shape: f32[1,128], index: 2, kind: input, shape index: {}]
  %s3 = inlined_call_operand.vmem [shape: f32[16,128], index: 3, kind: input, shape index: {}]
  %s4 = inlined_call_operand.vmem [shape: f32[128,16], index: 4, kind: input, shape index: {}]
  %s5 = inlined_call_operand.vmem [shape: f32[128,1], index: 5, kind: input, shape index: {}]
  %s6 = inlined_call_operand.vmem [shape: f32[128,128], index: 6, kind: input, shape index: {}]
  %s7 = inlined_call_operand.vmem [shape: f32[8,128], index: 7, kind: output, shape index: {}]
  %s8 = sld [smem:[#allocation0]]
  $region107: #{zerogo_forward.1} parent=0
    _
  %s10 = ssub.s32 1, %s8
  %s11 = scalar_select 0, %s10, %s8
  $region1: #{zerogo_forward.1} parent=0
    #allocation3 [shape = 'u8[65536]{0}', space=vmem, size = 0x10000, scoped, tag = 'input window, operand 0']
    loop: start=0, step=1, limit=4
    $region2: #{zerogo_forward.1} parent=1 // loop_pre_header
      _
    $region3: #{zerogo_forward.1} parent=1 // loop_header
      %s13 = sphi 0, %s17
      %p14 = scmp.ge.s32.totalorder %s13, 4
      %s20 = sphi 0, %s32
      %s21 = sphi 0, %s28
      %s22 = sphi 0, %s20
      %s23 = sphi 0, %s21
      %s24 = sphi 0, %s22
      %s25 = sphi 0, %s23
      %s37 = sphi 0, %s39
      %s40 = sphi 0, %s37
      %s41 = sphi 0, %s40
      %s57 = sphi 0, %s41
      %s61 = sphi 0, %s61
      %s63 = sphi 0, %s61
      %s64 = sphi 0, %s63
      %s78 = sphi 0, %s64
      %s82 = sphi 0, %s82
      %s84 = sphi 0, %s82
      %s85 = sphi 0, %s84
      %s99 = sphi 0, %s85
      %s103 = sphi 0, %s103
      %s105 = sphi 0, %s103
      %s106 = sphi 0, %s105
      %s120 = sphi 0, %s106
      %s124 = sphi 0, %s124
      %s126 = sphi 0, %s124
      %s127 = sphi 0, %s126
      %s141 = sphi 0, %s127
      %s145 = sphi 0, %s145
      %s147 = sphi 0, %s145
      %s148 = sphi 0, %s147
      %s162 = sphi 0, %s148
      %s166 = sphi 0, %s166
      %s168 = sphi 0, %s166
      %s169 = sphi 0, %s168
      %s183 = sphi 0, %s169
      %s189 = sphi 0, %s191
      %s192 = sphi 0, %s189
      %s193 = sphi 0, %s192
      %s209 = sphi 0, %s193
    $region4: #{zerogo_forward.1} parent=1 // loop_header_branch
      %16 = sbr.rel (%p14) target = $region8
    $region5: #{zerogo_forward.1} parent=1 // loop_body
      %s18 = ssub.s32 %s13, 1
      %s19 = ssub.s32 %s13, 2
      %s26 = sadd.s32 1, %s21
      %p27 = scmp.ge.s32.totalorder %s26, 2
      %s28 = scalar_select %p27, 0, %s26
      %s29 = sadd.s32 1, %s20
      %s30 = scalar_select %p27, %s29, %s20
      %p31 = scmp.ge.s32.totalorder %s30, 1
      %s32 = scalar_select %p31, 0, %s30
      %s33 = ssub.s32 %s20, %s32
      %s34 = ssub.s32 %s21, %s28
      %s35 = sor.u32 %s33, %s34
      %p36 = scmp.eq.s32.totalorder %s35, 0
      %s38 = sadd.s32 %s37, 1
      %s39 = scalar_select %p36, %s37, %s38
      %p42 = pneg %p36
      %p43 = scmp.eq.s32.totalorder %s13, 1
      %p44 = por %p42, %p43
      %p45 = scmp.ne.s32.totalorder %s37, %s40
      %p46 = scmp.eq.s32.totalorder %s13, 0
      %p47 = por %p45, %p46
      %p48 = scmp.ne.s32.totalorder %s37, %s40
      %p49 = scmp.eq.s32.totalorder %s18, 1
      %p50 = por %p48, %p49
      %p51 = scmp.ne.s32.totalorder %s40, %s41
      %p52 = scmp.eq.s32.totalorder %s18, 0
      %p53 = por %p51, %p52
      %p54 = scmp.ne.s32.totalorder %s40, %s41
      %p55 = scmp.eq.s32.totalorder %s19, 1
      %p56 = por %p54, %p55
      %p58 = scmp.ne.s32.totalorder %s41, %s57
      %p59 = scmp.eq.s32.totalorder %s19, 0
      %p60 = por %p58, %p59
      %s62 = sadd.s32 %s61, 1
      %p65 = scmp.eq.s32.totalorder %s13, 1
      %p66 = scmp.ne.s32.totalorder %s61, %s63
      %p67 = scmp.eq.s32.totalorder %s13, 0
      %p68 = por %p66, %p67
      %p69 = scmp.ne.s32.totalorder %s61, %s63
      %p70 = scmp.eq.s32.totalorder %s18, 1
      %p71 = por %p69, %p70
      %p72 = scmp.ne.s32.totalorder %s63, %s64
      %p73 = scmp.eq.s32.totalorder %s18, 0
      %p74 = por %p72, %p73
      %p75 = scmp.ne.s32.totalorder %s63, %s64
      %p76 = scmp.eq.s32.totalorder %s19, 1
      %p77 = por %p75, %p76
      %p79 = scmp.ne.s32.totalorder %s64, %s78
      %p80 = scmp.eq.s32.totalorder %s19, 0
      %p81 = por %p79, %p80
      %s83 = sadd.s32 %s82, 1
      %p86 = scmp.eq.s32.totalorder %s13, 1
      %p87 = scmp.ne.s32.totalorder %s82, %s84
      %p88 = scmp.eq.s32.totalorder %s13, 0
      %p89 = por %p87, %p88
      %p90 = scmp.ne.s32.totalorder %s82, %s84
      %p91 = scmp.eq.s32.totalorder %s18, 1
      %p92 = por %p90, %p91
      %p93 = scmp.ne.s32.totalorder %s84, %s85
      %p94 = scmp.eq.s32.totalorder %s18, 0
      %p95 = por %p93, %p94
      %p96 = scmp.ne.s32.totalorder %s84, %s85
      %p97 = scmp.eq.s32.totalorder %s19, 1
      %p98 = por %p96, %p97
      %p100 = scmp.ne.s32.totalorder %s85, %s99
      %p101 = scmp.eq.s32.totalorder %s19, 0
      %p102 = por %p100, %p101
      %s104 = sadd.s32 %s103, 1
      %p107 = scmp.eq.s32.totalorder %s13, 1
      %p108 = scmp.ne.s32.totalorder %s103, %s105
      %p109 = scmp.eq.s32.totalorder %s13, 0
      %p110 = por %p108, %p109
      %p111 = scmp.ne.s32.totalorder %s103, %s105
      %p112 = scmp.eq.s32.totalorder %s18, 1
      %p113 = por %p111, %p112
      %p114 = scmp.ne.s32.totalorder %s105, %s106
      %p115 = scmp.eq.s32.totalorder %s18, 0
      %p116 = por %p114, %p115
      %p117 = scmp.ne.s32.totalorder %s105, %s106
      %p118 = scmp.eq.s32.totalorder %s19, 1
      %p119 = por %p117, %p118
      %p121 = scmp.ne.s32.totalorder %s106, %s120
      %p122 = scmp.eq.s32.totalorder %s19, 0
      %p123 = por %p121, %p122
      %s125 = sadd.s32 %s124, 1
      %p128 = scmp.eq.s32.totalorder %s13, 1
      %p129 = scmp.ne.s32.totalorder %s124, %s126
      %p130 = scmp.eq.s32.totalorder %s13, 0
      %p131 = por %p129, %p130
      %p132 = scmp.ne.s32.totalorder %s124, %s126
      %p133 = scmp.eq.s32.totalorder %s18, 1
      %p134 = por %p132, %p133
      %p135 = scmp.ne.s32.totalorder %s126, %s127
      %p136 = scmp.eq.s32.totalorder %s18, 0
      %p137 = por %p135, %p136
      %p138 = scmp.ne.s32.totalorder %s126, %s127
      %p139 = scmp.eq.s32.totalorder %s19, 1
      %p140 = por %p138, %p139
      %p142 = scmp.ne.s32.totalorder %s127, %s141
      %p143 = scmp.eq.s32.totalorder %s19, 0
      %p144 = por %p142, %p143
      %s146 = sadd.s32 %s145, 1
      %p149 = scmp.eq.s32.totalorder %s13, 1
      %p150 = scmp.ne.s32.totalorder %s145, %s147
      %p151 = scmp.eq.s32.totalorder %s13, 0
      %p152 = por %p150, %p151
      %p153 = scmp.ne.s32.totalorder %s145, %s147
      %p154 = scmp.eq.s32.totalorder %s18, 1
      %p155 = por %p153, %p154
      %p156 = scmp.ne.s32.totalorder %s147, %s148
      %p157 = scmp.eq.s32.totalorder %s18, 0
      %p158 = por %p156, %p157
      %p159 = scmp.ne.s32.totalorder %s147, %s148
      %p160 = scmp.eq.s32.totalorder %s19, 1
      %p161 = por %p159, %p160
      %p163 = scmp.ne.s32.totalorder %s148, %s162
      %p164 = scmp.eq.s32.totalorder %s19, 0
      %p165 = por %p163, %p164
      %s167 = sadd.s32 %s166, 1
      %p170 = scmp.eq.s32.totalorder %s13, 1
      %p171 = scmp.ne.s32.totalorder %s166, %s168
      %p172 = scmp.eq.s32.totalorder %s13, 0
      %p173 = por %p171, %p172
      %p174 = scmp.ne.s32.totalorder %s166, %s168
      %p175 = scmp.eq.s32.totalorder %s18, 1
      %p176 = por %p174, %p175
      %p177 = scmp.ne.s32.totalorder %s168, %s169
      %p178 = scmp.eq.s32.totalorder %s18, 0
      %p179 = por %p177, %p178
      %p180 = scmp.ne.s32.totalorder %s168, %s169
      %p181 = scmp.eq.s32.totalorder %s19, 1
      %p182 = por %p180, %p181
      %p184 = scmp.ne.s32.totalorder %s169, %s183
      %p185 = scmp.eq.s32.totalorder %s19, 0
      %p186 = por %p184, %p185
      %s187 = ssub.s32 %s20, %s32
      %p188 = scmp.eq.s32.totalorder %s187, 0
      %s190 = sadd.s32 %s189, 1
      %s191 = scalar_select %p188, %s189, %s190
      %p194 = pneg %p188
      %p195 = scmp.eq.s32.totalorder %s13, 1
      %p196 = por %p194, %p195
      %p197 = scmp.ne.s32.totalorder %s189, %s192
      %p198 = scmp.eq.s32.totalorder %s13, 0
      %p199 = por %p197, %p198
      %p200 = scmp.ne.s32.totalorder %s189, %s192
      %p201 = scmp.eq.s32.totalorder %s18, 1
      %p202 = por %p200, %p201
      %p203 = scmp.ne.s32.totalorder %s192, %s193
      %p204 = scmp.eq.s32.totalorder %s18, 0
      %p205 = por %p203, %p204
      %p206 = scmp.ne.s32.totalorder %s192, %s193
      %p207 = scmp.eq.s32.totalorder %s19, 1
      %p208 = por %p206, %p207
      %p210 = scmp.ne.s32.totalorder %s193, %s209
      %p211 = scmp.eq.s32.totalorder %s19, 0
      %p212 = por %p210, %p211
      %p213 = scmp.le.s32.totalorder 1, %s13
      %p214 = scmp.lt.s32.totalorder %s13, 3
      %p215 = pnand %p213, %p214
      %p216 = pneg %p215
      // Predicated region
      $region9: #{zerogo_forward.1} parent=5 // pred_check
        _
      $region10: #{zerogo_forward.1} parent=5 // pred_check_branch
        %218 = sbr.rel (%p215) target = $region12
      $region11: #{zerogo_forward.1} parent=5 // pred_region
        %s219 = ssub.s32 %s13, 1
        // Predicated region
        $region13: #{zerogo_forward.1} parent=11 // pred_check
          %p220 = pneg %p74
        $region14: #{zerogo_forward.1} parent=11 // pred_check_branch
          %222 = sbr.rel (%p220) target = $region16
        $region15: #{zerogo_forward.1} parent=11 // pred_region
          _
        $region16: #{zerogo_forward.1} parent=11 // pred_fallthru
          _
        // Predicated region
        $region17: #{zerogo_forward.1} parent=11 // pred_check
          %p223 = pneg %p95
        $region18: #{zerogo_forward.1} parent=11 // pred_check_branch
          %225 = sbr.rel (%p223) target = $region20
        $region19: #{zerogo_forward.1} parent=11 // pred_region
          _
        $region20: #{zerogo_forward.1} parent=11 // pred_fallthru
          _
        // Predicated region
        $region21: #{zerogo_forward.1} parent=11 // pred_check
          %p226 = pneg %p116
        $region22: #{zerogo_forward.1} parent=11 // pred_check_branch
          %228 = sbr.rel (%p226) target = $region24
        $region23: #{zerogo_forward.1} parent=11 // pred_region
          _
        $region24: #{zerogo_forward.1} parent=11 // pred_fallthru
          _
        // Predicated region
        $region25: #{zerogo_forward.1} parent=11 // pred_check
          %p229 = pneg %p137
        $region26: #{zerogo_forward.1} parent=11 // pred_check_branch
          %231 = sbr.rel (%p229) target = $region28
        $region27: #{zerogo_forward.1} parent=11 // pred_region
          _
        $region28: #{zerogo_forward.1} parent=11 // pred_fallthru
          _
        // Predicated region
        $region29: #{zerogo_forward.1} parent=11 // pred_check
          %p232 = pneg %p158
        $region30: #{zerogo_forward.1} parent=11 // pred_check_branch
          %234 = sbr.rel (%p232) target = $region32
        $region31: #{zerogo_forward.1} parent=11 // pred_region
          _
        $region32: #{zerogo_forward.1} parent=11 // pred_fallthru
          _
        // Predicated region
        $region33: #{zerogo_forward.1} parent=11 // pred_check
          %p235 = pneg %p179
        $region34: #{zerogo_forward.1} parent=11 // pred_check_branch
          %237 = sbr.rel (%p235) target = $region36
        $region35: #{zerogo_forward.1} parent=11 // pred_region
          _
        $region36: #{zerogo_forward.1} parent=11 // pred_fallthru
          _
      $region12: #{zerogo_forward.1} parent=5 // pred_fallthru
        _
      %p238 = scmp.lt.s32.totalorder %s13, 2
      // Predicated region
      $region37: #{zerogo_forward.1} parent=5 // pred_check
        %p239 = pneg %p238
      $region38: #{zerogo_forward.1} parent=5 // pred_check_branch
        %241 = sbr.rel (%p239) target = $region40
      $region39: #{zerogo_forward.1} parent=5 // pred_region
        // Predicated region
        $region41: #{zerogo_forward.1} parent=39 // pred_check
          %p242 = pneg %p47
        $region42: #{zerogo_forward.1} parent=39 // pred_check_branch
          %244 = sbr.rel (%p242) target = $region44
        $region43: #{zerogo_forward.1} parent=39 // pred_region
          %s245 = sand.u32 %s37, 1
          %s246 = sand.u32 %s37, 1
          %s247 = smul.addr %s246, 64
          %s248 = scalar_lea.vmem [#allocation3], %s247
          %s249 = smul.u32 8, %s20
          %s250 = smul.addr %s249, 2
          %s251 = sadd.s32 %s21, %s250
          %s252 = smul.addr %s251, 8
          %s253 = scalar_lea.vmem %s0, %s252
          // Predicated region
          $region45: #{zerogo_forward.1} parent=43 // pred_check
            _
          $region46: #{zerogo_forward.1} parent=43 // pred_check_branch
            %255 = sbr.rel (0) target = $region48
          $region47: #{zerogo_forward.1} parent=43 // pred_region
            // Predicated region
            $region49: #{zerogo_forward.1} parent=47 // pred_check
              _
            $region50: #{zerogo_forward.1} parent=47 // pred_check_branch
              %257 = sbr.rel (0) target = $region52
            $region51: #{zerogo_forward.1} parent=47 // pred_region
              // Predicated region
              $region64: #{zerogo_forward.1} parent=51 // pred_check
                _
              $region65: #{zerogo_forward.1} parent=51 // pred_check_branch
                %287 = sbr.rel (0) target = $region67
              $region66: #{zerogo_forward.1} parent=51 // pred_region
                loop: start=0, step=1, limit=1
                $region68: #{zerogo_forward.1} parent=66 // loop_pre_header
                  _
                $region69: #{zerogo_forward.1} parent=66 // loop_header
                  %s289 = sphi 0, %s293
                  %p290 = scmp.ge.s32.totalorder %s289, 1
                  %s294 = sphi %s253, %s253
                  %s295 = sphi %s248, %s248
                $region70: #{zerogo_forward.1} parent=66 // loop_header_branch
                  %292 = sbr.rel (%p290) target = $region74
                $region71: #{zerogo_forward.1} parent=66 // loop_body
                  %v296 = vld [vmem:[%s294] sm:$0xff]
                  %297 = vst [vmem:[%s295] sm:$0xff] %v296
                  %v298 = vld [vmem:[%s294 + $0x10] sm:$0xff]
                  %299 = vst [vmem:[%s295 + $0x8] sm:$0xff] %v298
                  %v300 = vld [vmem:[%s294 + $0x20] sm:$0xff]
                  %301 = vst [vmem:[%s295 + $0x10] sm:$0xff] %v300
                  %v302 = vld [vmem:[%s294 + $0x30] sm:$0xff]
                  %303 = vst [vmem:[%s295 + $0x18] sm:$0xff] %v302
                  %v304 = vld [vmem:[%s294 + $0x40] sm:$0xff]
                  %305 = vst [vmem:[%s295 + $0x20] sm:$0xff] %v304
                  %v306 = vld [vmem:[%s294 + $0x50] sm:$0xff]
                  %307 = vst [vmem:[%s295 + $0x28] sm:$0xff] %v306
                  %v308 = vld [vmem:[%s294 + $0x60] sm:$0xff]
                  %309 = vst [vmem:[%s295 + $0x30] sm:$0xff] %v308
                  %v310 = vld [vmem:[%s294 + $0x70] sm:$0xff]
                  %311 = vst [vmem:[%s295 + $0x38] sm:$0xff] %v310
                $region72: #{zerogo_forward.1} parent=66 // loop_footer
                  %s293 = sadd.s32 1, %s289
                $region73: #{zerogo_forward.1} parent=66 // loop_footer_branch
                  %288 = sbr.rel target = $region69
                $region74: #{zerogo_forward.1} parent=66 // loop_exit
                  _
              $region67: #{zerogo_forward.1} parent=51 // pred_fallthru
                _
              // Predicated region
              $region75: #{zerogo_forward.1} parent=51 // pred_check
                _
              $region76: #{zerogo_forward.1} parent=51 // pred_check_branch
                %313 = sbr.rel target = $region78
              $region77: #{zerogo_forward.1} parent=51 // pred_region
                _
              $region78: #{zerogo_forward.1} parent=51 // pred_fallthru
                _
            $region52: #{zerogo_forward.1} parent=47 // pred_fallthru
              _
            // Predicated region
            $region53: #{zerogo_forward.1} parent=47 // pred_check
              _
            $region54: #{zerogo_forward.1} parent=47 // pred_check_branch
              %259 = sbr.rel target = $region56
            $region55: #{zerogo_forward.1} parent=47 // pred_region
              %s261 = ssub.s32 256, 1
              loop: start=0, step=1, limit=1
              $region57: #{zerogo_forward.1} parent=55 // loop_pre_header
                _
              $region58: #{zerogo_forward.1} parent=55 // loop_header
                %s263 = sphi 0, %s267
                %p264 = scmp.ge.s32.totalorder %s263, 1
                %s268 = sphi %s253, %s253
                %s269 = sphi %s248, %s248
              $region59: #{zerogo_forward.1} parent=55 // loop_header_branch
                %266 = sbr.rel (%p264) target = $region63
              $region60: #{zerogo_forward.1} parent=55 // loop_body
                %v270 = vld [vmem:[%s268] sm:%s261]
                %271 = vst [vmem:[%s269] sm:%s261] %v270
                %v272 = vld [vmem:[%s268 + $0x10] sm:%s261]
                %273 = vst [vmem:[%s269 + $0x8] sm:%s261] %v272
                %v274 = vld [vmem:[%s268 + $0x20] sm:%s261]
                %275 = vst [vmem:[%s269 + $0x10] sm:%s261] %v274
                %v276 = vld [vmem:[%s268 + $0x30] sm:%s261]
                %277 = vst [vmem:[%s269 + $0x18] sm:%s261] %v276
                %v278 = vld [vmem:[%s268 + $0x40] sm:%s261]
                %279 = vst [vmem:[%s269 + $0x20] sm:%s261] %v278
                %v280 = vld [vmem:[%s268 + $0x50] sm:%s261]
                %281 = vst [vmem:[%s269 + $0x28] sm:%s261] %v280
                %v282 = vld [vmem:[%s268 + $0x60] sm:%s261]
                %283 = vst [vmem:[%s269 + $0x30] sm:%s261] %v282
                %v284 = vld [vmem:[%s268 + $0x70] sm:%s261]
                %285 = vst [vmem:[%s269 + $0x38] sm:%s261] %v284
              $region61: #{zerogo_forward.1} parent=55 // loop_footer
                %s267 = sadd.s32 1, %s263
              $region62: #{zerogo_forward.1} parent=55 // loop_footer_branch
                %262 = sbr.rel target = $region58
              $region63: #{zerogo_forward.1} parent=55 // loop_exit
                _
            $region56: #{zerogo_forward.1} parent=47 // pred_fallthru
              _
          $region48: #{zerogo_forward.1} parent=43 // pred_fallthru
            _
          %314 = vnop
        $region44: #{zerogo_forward.1} parent=39 // pred_fallthru
          _
      $region40: #{zerogo_forward.1} parent=5 // pred_fallthru
        _
      %p315 = scmp.le.s32.totalorder 1, %s13
      %p316 = scmp.lt.s32.totalorder %s13, 3
      %p317 = pnand %p315, %p316
      %p318 = pneg %p317
      // Predicated region
      $region79: #{zerogo_forward.1} parent=5 // pred_check
        _
      $region80: #{zerogo_forward.1} parent=5 // pred_check_branch
        %320 = sbr.rel (%p317) target = $region82
      $region81: #{zerogo_forward.1} parent=5 // pred_region
        %s321 = ssub.s32 %s13, 1
        %s322 = sand.u32 %s40, 1
        %s323 = sand.u32 %s40, 1
        %s324 = smul.addr %s323, 64
        %s325 = scalar_lea.vmem [#allocation3], %s324
        // Predicated region
        $region83: #{zerogo_forward.1} parent=81 // pred_check
          %p326 = pneg %p53
        $region84: #{zerogo_forward.1} parent=81 // pred_check_branch
          %328 = sbr.rel (%p326) target = $region86
        $region85: #{zerogo_forward.1} parent=81 // pred_region
          _
        $region86: #{zerogo_forward.1} parent=81 // pred_fallthru
          _
        %s329 = sand.u32 %s40, 1
        %s330 = sand.u32 %s40, 1
        %s331 = smul.addr %s330, 64
        %s332 = scalar_lea.vmem [#allocation3], %s331
        %p333 = pneg %p53
        %p334 = pneg %p50
        %p335 = pneg %p74
        %p336 = pneg %p71
        %p337 = pneg %p95
        %p338 = pneg %p92
        %p339 = pneg %p116
        %p340 = pneg %p113
        %p341 = pneg %p137
        %p342 = pneg %p134
        %p343 = pneg %p158
        %p344 = pneg %p155
        %p345 = pneg %p179
        %p346 = pneg %p176
        %p347 = pneg %p205
        %p348 = pneg %p202
        %p349 = scmp.lt.s32.totalorder %s22, 0
        %s350 = scalar_select %p349, %s22, 0
        %s351 = smul.addr %s350, 8
        %s352 = scalar_lea.vmem %s7, %s351
        %s353 = smul.u32 8, %s22
        %p354 = scmp.lt.s32.totalorder %s22, 0
        %s355 = scalar_select %p354, %s22, 0
        %s356 = smul.addr %s355, 8
        %s357 = scalar_lea.vmem %s7, %s356
        %p358 = scmp.eq.s32.totalorder %s23, 0
        // Predicated region
        $region87: #{zerogo_forward.1} parent=81 // pred_check
          %p359 = pneg %p358
        $region88: #{zerogo_forward.1} parent=81 // pred_check_branch
          %361 = sbr.rel (%p359) target = $region90
        $region89: #{zerogo_forward.1} parent=81 // pred_region
          %362 = vst [vmem:[#allocation2] sm:$0xff] 0.0
        $region90: #{zerogo_forward.1} parent=81 // pred_fallthru
          _
        %v363 = vld [vmem:[%s325] sm:$0xff]
        %v364 = vld [vmem:[%s325 + $0x8] sm:$0xff]
        %v365 = vld [vmem:[%s325 + $0x10] sm:$0xff]
        %v366 = vld [vmem:[%s325 + $0x18] sm:$0xff]
        %v367 = vld [vmem:[%s325 + $0x20] sm:$0xff]
        %v368 = vld [vmem:[%s325 + $0x28] sm:$0xff]
        %v369 = vld [vmem:[%s325 + $0x30] sm:$0xff]
        %v370 = vld [vmem:[%s325 + $0x38] sm:$0xff]
        %v371 = vld [vmem:[%s1] sm:$0xff]
        %v372 = vld [vmem:[%s1 + $0x8] sm:$0xf]
        %v373 = vld [vmem:[%s2] sm:$0x1]
        %v375 = vperm.slane %v373, 0
        %vm377 = vcmask 97280
        %v379 = vsel %vm377, %v363, 0
        %v382 = vsel %vm377, %v364, 0
        %v385 = vsel %vm377, %v365, 0
        %v388 = vsel %vm377, %v366, 0
        %v391 = vsel %vm377, %v367, 0
        %v394 = vsel %vm377, %v368, 0
        %v397 = vsel %vm377, %v369, 0
        %v400 = vsel %vm377, %v370, 0
        %vm402 = vcmask 1043456
        %v404 = vsel %vm402, %v372, 0
        %406 = vmatpush.msra.mxu0 0.0
        %407 = vmatpush.msra.mxu0 0.0
        %408 = vmatpush.msra.mxu0 0.0
        %409 = vmatpush.msra.mxu0 0.0
        %410 = vmatpush.msra.mxu0 0.0
        %411 = vmatpush.msra.mxu0 0.0
        %412 = vmatpush.msra.mxu0 0.0
        %413 = vmatpush.msra.mxu0 0.0
        %414 = vmatpush.msra.mxu0 0.0
        %415 = vmatpush.msra.mxu0 0.0
        %416 = vmatpush.msra.mxu0 0.0
        %417 = vmatpush.msra.mxu0 0.0
        %418 = vmatpush.msra.mxu0 0.0
        %419 = vmatpush.msra.mxu0 0.0
        %420 = vmatpush.msra.mxu0 %v404
        %421 = vmatpush.msra.mxu0 %v371
        %422 = vmatmul.f32.gmra.mxu0 %v379
        %v423 = vpop.f32.mrf.mxu0
        %v424 = vadd.f32 %v375, %v423
        %425 = vmatmul.f32.gmra.mxu0 %v382
        %v426 = vpop.f32.mrf.mxu0
        %v427 = vadd.f32 %v375, %v426
        %428 = vmatmul.f32.gmra.mxu0 %v385
        %v429 = vpop.f32.mrf.mxu0
        %v430 = vadd.f32 %v375, %v429
        %431 = vmatmul.f32.gmra.mxu0 %v388
        %v432 = vpop.f32.mrf.mxu0
        %v433 = vadd.f32 %v375, %v432
        %434 = vmatmul.f32.gmra.mxu0 %v391
        %v435 = vpop.f32.mrf.mxu0
        %v436 = vadd.f32 %v375, %v435
        %437 = vmatmul.f32.gmra.mxu0 %v394
        %v438 = vpop.f32.mrf.mxu0
        %v439 = vadd.f32 %v375, %v438
        %440 = vmatmul.f32.gmra.mxu0 %v397
        %v441 = vpop.f32.mrf.mxu0
        %v442 = vadd.f32 %v375, %v441
        %443 = vmatmul.f32.gmra.mxu0 %v400
        %v444 = vpop.f32.mrf.mxu0
        %v445 = vadd.f32 %v375, %v444
        %446 = vdwg.mxu0
        %v447 = vmax.f32 %v424, 0.0
        %v448 = vmax.f32 %v427, 0.0
        %v449 = vmax.f32 %v430, 0.0
        %v450 = vmax.f32 %v433, 0.0
        %v451 = vmax.f32 %v436, 0.0
        %v452 = vmax.f32 %v439, 0.0
        %v453 = vmax.f32 %v442, 0.0
        %v454 = vmax.f32 %v445, 0.0
        %v455 = vld [vmem:[#allocation2] sm:$0xff]
        %v456 = vrot.slane %v447, 4
        %v457 = vmax.f32 %v447, %v456
        %v458 = vrot.slane %v457, 2
        %v459 = vmax.f32 %v457, %v458
        %v460 = vrot.slane %v459, 1
        %v461 = vmax.f32 %v459, %v460
        %v462 = vrot.slane %v448, 4
        %v463 = vmax.f32 %v448, %v462
        %v464 = vrot.slane %v463, 2
        %v465 = vmax.f32 %v463, %v464
        %v466 = vrot.slane %v465, 1
        %v467 = vmax.f32 %v465, %v466
        %v468 = vrot.slane %v449, 4
        %v469 = vmax.f32 %v449, %v468
        %v470 = vrot.slane %v469, 2
        %v471 = vmax.f32 %v469, %v470
        %v472 = vrot.slane %v471, 1
        %v473 = vmax.f32 %v471, %v472
        %v474 = vrot.slane %v450, 4
        %v475 = vmax.f32 %v450, %v474
        %v476 = vrot.slane %v475, 2
        %v477 = vmax.f32 %v475, %v476
        %v478 = vrot.slane %v477, 1
        %v479 = vmax.f32 %v477, %v478
        %v480 = vrot.slane %v451, 4
        %v481 = vmax.f32 %v451, %v480
        %v482 = vrot.slane %v481, 2
        %v483 = vmax.f32 %v481, %v482
        %v484 = vrot.slane %v483, 1
        %v485 = vmax.f32 %v483, %v484
        %v486 = vrot.slane %v452, 4
        %v487 = vmax.f32 %v452, %v486
        %v488 = vrot.slane %v487, 2
        %v489 = vmax.f32 %v487, %v488
        %v490 = vrot.slane %v489, 1
        %v491 = vmax.f32 %v489, %v490
        %v492 = vrot.slane %v453, 4
        %v493 = vmax.f32 %v453, %v492
        %v494 = vrot.slane %v493, 2
        %v495 = vmax.f32 %v493, %v494
        %v496 = vrot.slane %v495, 1
        %v497 = vmax.f32 %v495, %v496
        %v498 = vrot.slane %v454, 4
        %v499 = vmax.f32 %v454, %v498
        %v500 = vrot.slane %v499, 2
        %v501 = vmax.f32 %v499, %v500
        %v502 = vrot.slane %v501, 1
        %v503 = vmax.f32 %v501, %v502
        %vm512 = vcmask 1041409
        %v513 = vsel %vm512, %v467, %v461
        %vm514 = vcmask 1042434
        %v515 = vsel %vm514, %v473, %v513
        %vm516 = vcmask 1043459
        %v517 = vsel %vm516, %v479, %v515
        %vm518 = vcmask 1044484
        %v519 = vsel %vm518, %v485, %v517
        %vm520 = vcmask 1045509
        %v521 = vsel %vm520, %v491, %v519
        %vm522 = vcmask 1046534
        %v523 = vsel %vm522, %v497, %v521
        %vm524 = vcmask 1047559
        %v525 = vsel %vm524, %v503, %v523
        %v527 = vmax.f32 %v455, %v525
        %528 = vst [vmem:[#allocation2] sm:$0xff] %v527
        %p529 = scmp.eq.s32.totalorder %s23, 1
        // Predicated region
        $region91: #{zerogo_forward.1} parent=81 // pred_check
          %p530 = pneg %p529
        $region92: #{zerogo_forward.1} parent=81 // pred_check_branch
          %532 = sbr.rel (%p530) target = $region94
        $region93: #{zerogo_forward.1} parent=81 // pred_region
          %v533 = vld [vmem:[%s4] sm:$0xff]
          %v534 = vld [vmem:[%s4 + $0x8] sm:$0xff]
          %v535 = vld [vmem:[%s4 + $0x10] sm:$0xff]
          %v536 = vld [vmem:[%s4 + $0x18] sm:$0xff]
          %v537 = vld [vmem:[%s4 + $0x20] sm:$0xff]
          %v538 = vld [vmem:[%s4 + $0x28] sm:$0xff]
          %v539 = vld [vmem:[%s4 + $0x30] sm:$0xff]
          %v540 = vld [vmem:[%s4 + $0x38] sm:$0xff]
          %v541 = vld [vmem:[%s4 + $0x40] sm:$0xff]
          %v542 = vld [vmem:[%s4 + $0x48] sm:$0xff]
          %v543 = vld [vmem:[%s4 + $0x50] sm:$0xff]
          %v544 = vld [vmem:[%s4 + $0x58] sm:$0xff]
          %v545 = vld [vmem:[%s4 + $0x60] sm:$0xff]
          %v546 = vld [vmem:[%s4 + $0x68] sm:$0xff]
          %v547 = vld [vmem:[%s4 + $0x70] sm:$0xff]
          %v548 = vld [vmem:[%s4 + $0x78] sm:$0xff]
          %v549 = vld [vmem:[%s3] sm:$0xff]
          %v550 = vld [vmem:[%s3 + $0x8] sm:$0xff]
          %v551 = vld [vmem:[%s5] sm:$0xff]
          %v552 = vld [vmem:[%s5 + $0x8] sm:$0xff]
          %v553 = vld [vmem:[%s5 + $0x10] sm:$0xff]
          %v554 = vld [vmem:[%s5 + $0x18] sm:$0xff]
          %v555 = vld [vmem:[%s5 + $0x20] sm:$0xff]
          %v556 = vld [vmem:[%s5 + $0x28] sm:$0xff]
          %v557 = vld [vmem:[%s5 + $0x30] sm:$0xff]
          %v558 = vld [vmem:[%s5 + $0x38] sm:$0xff]
          %v559 = vld [vmem:[%s5 + $0x40] sm:$0xff]
          %v560 = vld [vmem:[%s5 + $0x48] sm:$0xff]
          %v561 = vld [vmem:[%s5 + $0x50] sm:$0xff]
          %v562 = vld [vmem:[%s5 + $0x58] sm:$0xff]
          %v563 = vld [vmem:[%s5 + $0x60] sm:$0xff]
          %v564 = vld [vmem:[%s5 + $0x68] sm:$0xff]
          %v565 = vld [vmem:[%s5 + $0x70] sm:$0xff]
          %v566 = vld [vmem:[%s5 + $0x78] sm:$0xff]
          %568 = vset.pattern.permute.xlu0 0
          %569 = vperm.xlu0 %568, %v551
          %v570 = vpop.permute.xlu0 %569
          %573 = vset.pattern.permute.xlu0 0
          %574 = vperm.xlu0 %573, %v552
          %v575 = vpop.permute.xlu0 %574
          %578 = vset.pattern.permute.xlu0 0
          %579 = vperm.xlu0 %578, %v553
          %v580 = vpop.permute.xlu0 %579
          %583 = vset.pattern.permute.xlu0 0
          %584 = vperm.xlu0 %583, %v554
          %v585 = vpop.permute.xlu0 %584
          %588 = vset.pattern.permute.xlu0 0
          %589 = vperm.xlu0 %588, %v555
          %v590 = vpop.permute.xlu0 %589
          %593 = vset.pattern.permute.xlu0 0
          %594 = vperm.xlu0 %593, %v556
          %v595 = vpop.permute.xlu0 %594
          %598 = vset.pattern.permute.xlu0 0
          %599 = vperm.xlu0 %598, %v557
          %v600 = vpop.permute.xlu0 %599
          %603 = vset.pattern.permute.xlu0 0
          %604 = vperm.xlu0 %603, %v558
          %v605 = vpop.permute.xlu0 %604
          %608 = vset.pattern.permute.xlu0 0
          %609 = vperm.xlu0 %608, %v559
          %v610 = vpop.permute.xlu0 %609
          %613 = vset.pattern.permute.xlu0 0
          %614 = vperm.xlu0 %613, %v560
          %v615 = vpop.permute.xlu0 %614
          %618 = vset.pattern.permute.xlu0 0
          %619 = vperm.xlu0 %618, %v561
          %v620 = vpop.permute.xlu0 %619
          %623 = vset.pattern.permute.xlu0 0
          %624 = vperm.xlu0 %623, %v562
          %v625 = vpop.permute.xlu0 %624
          %628 = vset.pattern.permute.xlu0 0
          %629 = vperm.xlu0 %628, %v563
          %v630 = vpop.permute.xlu0 %629
          %633 = vset.pattern.permute.xlu0 0
          %634 = vperm.xlu0 %633, %v564
          %v635 = vpop.permute.xlu0 %634
          %638 = vset.pattern.permute.xlu0 0
          %639 = vperm.xlu0 %638, %v565
          %v640 = vpop.permute.xlu0 %639
          %643 = vset.pattern.permute.xlu0 0
          %644 = vperm.xlu0 %643, %v566
          %v645 = vpop.permute.xlu0 %644
          %vm647 = vcmask 130048
          %v649 = vsel %vm647, %v533, 0
          %v652 = vsel %vm647, %v534, 0
          %v655 = vsel %vm647, %v535, 0
          %v658 = vsel %vm647, %v536, 0
          %v661 = vsel %vm647, %v537, 0
          %v664 = vsel %vm647, %v538, 0
          %v667 = vsel %vm647, %v539, 0
          %v670 = vsel %vm647, %v540, 0
          %v673 = vsel %vm647, %v541, 0
          %v676 = vsel %vm647, %v542, 0
          %v679 = vsel %vm647, %v543, 0
          %v682 = vsel %vm647, %v544, 0
          %v685 = vsel %vm647, %v545, 0
          %v688 = vsel %vm647, %v546, 0
          %v691 = vsel %vm647, %v547, 0
          %v694 = vsel %vm647, %v548, 0
          %696 = vmatpush.msra.mxu0 0.0
          %697 = vmatpush.msra.mxu0 0.0
          %698 = vmatpush.msra.mxu0 0.0
          %699 = vmatpush.msra.mxu0 0.0
          %700 = vmatpush.msra.mxu0 0.0
          %701 = vmatpush.msra.mxu0 0.0
          %702 = vmatpush.msra.mxu0 0.0
          %703 = vmatpush.msra.mxu0 0.0
          %704 = vmatpush.msra.mxu0 0.0
          %705 = vmatpush.msra.mxu0 0.0
          %706 = vmatpush.msra.mxu0 0.0
          %707 = vmatpush.msra.mxu0 0.0
          %708 = vmatpush.msra.mxu0 0.0
          %709 = vmatpush.msra.mxu0 0.0
          %710 = vmatpush.msra.mxu0 %v550
          %711 = vmatpush.msra.mxu0 %v549
          %712 = vmatmul.f32.gmra.mxu0 %v649
          %v713 = vpop.f32.mrf.mxu0
          %v714 = vadd.f32 %v570, %v713
          %715 = vmatmul.f32.gmra.mxu0 %v652
          %v716 = vpop.f32.mrf.mxu0
          %v717 = vadd.f32 %v575, %v716
          %718 = vmatmul.f32.gmra.mxu0 %v655
          %v719 = vpop.f32.mrf.mxu0
          %v720 = vadd.f32 %v580, %v719
          %721 = vmatmul.f32.gmra.mxu0 %v658
          %v722 = vpop.f32.mrf.mxu0
          %v723 = vadd.f32 %v585, %v722
          %724 = vmatmul.f32.gmra.mxu0 %v661
          %v725 = vpop.f32.mrf.mxu0
          %v726 = vadd.f32 %v590, %v725
          %727 = vmatmul.f32.gmra.mxu0 %v664
          %v728 = vpop.f32.mrf.mxu0
          %v729 = vadd.f32 %v595, %v728
          %730 = vmatmul.f32.gmra.mxu0 %v667
          %v731 = vpop.f32.mrf.mxu0
          %v732 = vadd.f32 %v600, %v731
          %733 = vmatmul.f32.gmra.mxu0 %v670
          %v734 = vpop.f32.mrf.mxu0
          %v735 = vadd.f32 %v605, %v734
          %736 = vmatmul.f32.gmra.mxu0 %v673
          %v737 = vpop.f32.mrf.mxu0
          %v738 = vadd.f32 %v610, %v737
          %739 = vmatmul.f32.gmra.mxu0 %v676
          %v740 = vpop.f32.mrf.mxu0
          %v741 = vadd.f32 %v615, %v740
          %742 = vmatmul.f32.gmra.mxu0 %v679
          %v743 = vpop.f32.mrf.mxu0
          %v744 = vadd.f32 %v620, %v743
          %745 = vmatmul.f32.gmra.mxu0 %v682
          %v746 = vpop.f32.mrf.mxu0
          %v747 = vadd.f32 %v625, %v746
          %748 = vmatmul.f32.gmra.mxu0 %v685
          %v749 = vpop.f32.mrf.mxu0
          %v750 = vadd.f32 %v630, %v749
          %751 = vmatmul.f32.gmra.mxu0 %v688
          %v752 = vpop.f32.mrf.mxu0
          %v753 = vadd.f32 %v635, %v752
          %754 = vmatmul.f32.gmra.mxu0 %v691
          %v755 = vpop.f32.mrf.mxu0
          %v756 = vadd.f32 %v640, %v755
          %757 = vmatmul.f32.gmra.mxu0 %v694
          %v758 = vpop.f32.mrf.mxu0
          %v759 = vadd.f32 %v645, %v758
          %760 = vdwg.mxu0
          %v761 = vmax.f32 %v714, 0.0
          %v762 = vmax.f32 %v717, 0.0
          %v763 = vmax.f32 %v720, 0.0
          %v764 = vmax.f32 %v723, 0.0
          %v765 = vmax.f32 %v726, 0.0
          %v766 = vmax.f32 %v729, 0.0
          %v767 = vmax.f32 %v732, 0.0
          %v768 = vmax.f32 %v735, 0.0
          %v769 = vmax.f32 %v738, 0.0
          %v770 = vmax.f32 %v741, 0.0
          %v771 = vmax.f32 %v744, 0.0
          %v772 = vmax.f32 %v747, 0.0
          %v773 = vmax.f32 %v750, 0.0
          %v774 = vmax.f32 %v753, 0.0
          %v775 = vmax.f32 %v756, 0.0
          %v776 = vmax.f32 %v759, 0.0
          %v777 = vld [vmem:[#allocation2] sm:$0xff]
          %v778 = vld [vmem:[%s6] sm:$0xff]
          %v779 = vld [vmem:[%s6 + $0x8] sm:$0xff]
          %v780 = vld [vmem:[%s6 + $0x10] sm:$0xff]
          %v781 = vld [vmem:[%s6 + $0x18] sm:$0xff]
          %v782 = vld [vmem:[%s6 + $0x20] sm:$0xff]
          %v783 = vld [vmem:[%s6 + $0x28] sm:$0xff]
          %v784 = vld [vmem:[%s6 + $0x30] sm:$0xff]
          %v785 = vld [vmem:[%s6 + $0x38] sm:$0xff]
          %v786 = vld [vmem:[%s6 + $0x40] sm:$0xff]
          %v787 = vld [vmem:[%s6 + $0x48] sm:$0xff]
          %v788 = vld [vmem:[%s6 + $0x50] sm:$0xff]
          %v789 = vld [vmem:[%s6 + $0x58] sm:$0xff]
          %v790 = vld [vmem:[%s6 + $0x60] sm:$0xff]
          %v791 = vld [vmem:[%s6 + $0x68] sm:$0xff]
          %v792 = vld [vmem:[%s6 + $0x70] sm:$0xff]
          %v793 = vld [vmem:[%s6 + $0x78] sm:$0xff]
          %794 = vmatpush.msra.mxu0 %v793
          %795 = vmatpush.msra.mxu0 %v792
          %796 = vmatpush.msra.mxu0 %v791
          %797 = vmatpush.msra.mxu0 %v790
          %798 = vmatpush.msra.mxu0 %v789
          %799 = vmatpush.msra.mxu0 %v788
          %800 = vmatpush.msra.mxu0 %v787
          %801 = vmatpush.msra.mxu0 %v786
          %802 = vmatpush.msra.mxu0 %v785
          %803 = vmatpush.msra.mxu0 %v784
          %804 = vmatpush.msra.mxu0 %v783
          %805 = vmatpush.msra.mxu0 %v782
          %806 = vmatpush.msra.mxu0 %v781
          %807 = vmatpush.msra.mxu0 %v780
          %808 = vmatpush.msra.mxu0 %v779
          %809 = vmatpush.msra.mxu0 %v778
          %810 = vmatmul.f32.gmra.mxu0 %v777
          %v811 = vpop.f32.mrf.mxu0
          %v812 = vadd.f32 0.0, %v811
          %813 = vdwg.mxu0
          %814 = vmatpush.msra.mxu0 %v776
          %815 = vmatpush.msra.mxu0 %v775
          %816 = vmatpush.msra.mxu0 %v774
          %817 = vmatpush.msra.mxu0 %v773
          %818 = vmatpush.msra.mxu0 %v772
          %819 = vmatpush.msra.mxu0 %v771
          %820 = vmatpush.msra.mxu0 %v770
          %821 = vmatpush.msra.mxu0 %v769
          %822 = vmatpush.msra.mxu0 %v768
          %823 = vmatpush.msra.mxu0 %v767
          %824 = vmatpush.msra.mxu0 %v766
          %825 = vmatpush.msra.mxu0 %v765
          %826 = vmatpush.msra.mxu0 %v764
          %827 = vmatpush.msra.mxu0 %v763
          %828 = vmatpush.msra.mxu0 %v762
          %829 = vmatpush.msra.mxu0 %v761
          %830 = vmatmul.f32.gmra.mxu0 %v812
          %v831 = vpop.f32.mrf.mxu0
          %v832 = vadd.f32 0.0, %v831
          %833 = vdwg.mxu0
          %834 = vst [vmem:[%s357] sm:$0xff] %v832
        $region94: #{zerogo_forward.1} parent=81 // pred_fallthru
          _
        %p835 = scmp.lt.s32.totalorder %s22, 0
        %s836 = scalar_select %p835, %s22, 0
        %s837 = smul.addr %s836, 8
        %s838 = scalar_lea.vmem %s7, %s837
        // Predicated region
        $region95: #{zerogo_forward.1} parent=81 // pred_check
          %p839 = pneg %p202
        $region96: #{zerogo_forward.1} parent=81 // pred_check_branch
          %841 = sbr.rel (%p839) target = $region98
        $region97: #{zerogo_forward.1} parent=81 // pred_region
          _
        $region98: #{zerogo_forward.1} parent=81 // pred_fallthru
          _
        // Predicated region
        $region99: #{zerogo_forward.1} parent=81 // pred_check
          %p842 = pneg %p202
        $region100: #{zerogo_forward.1} parent=81 // pred_check_branch
          %844 = sbr.rel (%p842) target = $region102
        $region101: #{zerogo_forward.1} parent=81 // pred_region
          %p845 = scmp.lt.s32.totalorder %s22, 0
          %s846 = scalar_select %p845, %s22, 0
          %s847 = smul.addr %s846, 8
          %s848 = scalar_lea.vmem %s7, %s847
        $region102: #{zerogo_forward.1} parent=81 // pred_fallthru
          _
      $region82: #{zerogo_forward.1} parent=5 // pred_fallthru
        _
      %p849 = scmp.le.s32.totalorder 2, %s13
      // Predicated region
      $region103: #{zerogo_forward.1} parent=5 // pred_check
        %p850 = pneg %p849
      $region104: #{zerogo_forward.1} parent=5 // pred_check_branch
        %852 = sbr.rel (%p850) target = $region106
      $region105: #{zerogo_forward.1} parent=5 // pred_region
        %s853 = ssub.s32 %s13, 2
      $region106: #{zerogo_forward.1} parent=5 // pred_fallthru
        _
    $region6: #{zerogo_forward.1} parent=1 // loop_footer
      %s17 = sadd.s32 1, %s13
    $region7: #{zerogo_forward.1} parent=1 // loop_footer_branch
      %12 = sbr.rel target = $region3
    $region8: #{zerogo_forward.1} parent=1 // loop_exit
      _

</llo_original>
